<compile_context>
chip_gen: v7x
topology: tpu7x:2x2x1
jax: 0.10.0
libtpu: 0.0.40
codegen_flags: <defaults>
</compile_context>

<pallas_src>
import functools

import jax
import jax.numpy as jnp
from jax.experimental import pallas as pl
from jax.experimental.pallas import tpu as pltpu


def fc1_kernel(x_ref, w1_ref, h_ref):
    """Partial sums of x @ w1 for one core's slice of the K (=D) reduction.

    Grid = (NC, nk_per_core).  The (Tf, F) output block for core `c` has a
    constant index map along the inner reduction axis, so it stays resident in
    VMEM and doubles as the f32 accumulator.  Bias + relu are applied in fc2.
    """
    k = pl.program_id(1)

    @pl.when(k == 0)
    def _init():
        h_ref[...] = jnp.zeros_like(h_ref)

    # Weights may be streamed as bf16 (half the HBM bytes); convert in VMEM and
    # accumulate in f32.  x stays f32.
    h_ref[...] += jnp.dot(x_ref[...], w1_ref[...].astype(jnp.float32),
                          preferred_element_type=jnp.float32)


def fc2_kernel(yaw_ref, hparts_ref, b1_ref, w2_ref, b2_ref, x_ref, out_ref):
    """One lane-dense (Tf, tile_d) column tile: out = yaw*relu(h@w2+b2) + x.

    h = relu(sum_c partials[c] + b1) is recomputed per tile: it is a tiny
    (Tf, F) VPU op, fully hidden under the w2-tile DMA.
    """
    nc = hparts_ref.shape[0]          # static
    h = hparts_ref[0]
    for c in range(1, nc):
        h = h + hparts_ref[c]
    h = jnp.maximum(h + b1_ref[...], 0.0)

    y = jnp.dot(h, w2_ref[...].astype(jnp.float32),
                preferred_element_type=jnp.float32)
    y = jnp.maximum(y + b2_ref[...], 0.0)
    out_ref[...] = yaw_ref[0, 0] * y + x_ref[...]


def _maybe_buffered(block_shape, index_map, steps):
    """Weight-tile BlockSpec; 3-deep pipelining only when there are enough steps."""
    if steps >= 3:
        return pl.BlockSpec(block_shape, index_map, pipeline_mode=pl.Buffered(3))
    return pl.BlockSpec(block_shape, index_map)


@functools.partial(jax.jit, static_argnames=("tile_d", "tile_k"))
def branch_forward(in_x, yaw, in_y, w1, b1, w2, b2, tile_d=None, tile_k=None):
    """JAX/Pallas equivalent of Branch.forward.

    in_x, in_y: (Tf, Cf, Hf, Wf) float32 (in_y unused, kept for API fidelity)
    yaw:        scalar float32
    w1: (D, F), b1: (F,)   -- fc1 weights, already transposed vs. torch
    w2: (F, D), b2: (D,)   -- fc2 weights, already transposed vs. torch

    Weights are streamed at whatever dtype the caller persists them in (pass
    bf16 once-converted params to halve the dominant HBM traffic); no dtype
    casts of the weights happen inside this jitted function.
    """
    del in_y  # flattened-but-unused in the reference forward
    Tf, Cf, Hf, Wf = in_x.shape
    D = Cf * Hf * Wf
    F = w1.shape[1]

    # Tile selection: as large as possible, keeping only >= 2 grid steps so the
    # fc1 reduction can split across v7x's 2 TensorCores and fc2 still
    # pipelines.  At D=65536: tile_k = tile_d = 16384 -> 4 steps each.
    if tile_k is None:
        tile_k = min(D, 16384)
        while D // tile_k < 2 and tile_k > 128:
            tile_k //= 2
    if tile_d is None:
        tile_d = min(D, 16384)
        while D // tile_d < 2 and tile_d > 128:
            tile_d //= 2
    assert D % tile_k == 0 and tile_k % 128 == 0
    assert D % tile_d == 0 and tile_d % 128 == 0

    nk = D // tile_k
    NC = 2 if (nk >= 2 and nk % 2 == 0) else 1      # fc1 core-split factor
    nk_per_core = nk // NC
    nd = D // tile_d

    x2d = in_x.reshape(Tf, D)
    yaw2d = jnp.asarray(yaw, jnp.float32).reshape(1, 1)
    b1_2d = b1.reshape(1, F).astype(jnp.float32)
    b2_2d = b2.reshape(1, D).astype(jnp.float32)

    w_bytes = jnp.dtype(w1.dtype).itemsize

    # --- fc1: partial sums of x @ w1 (bias/relu deferred to fc2) -------------
    fc1_cost = pl.CostEstimate(
        flops=2 * Tf * D * F,
        transcendentals=0,
        bytes_accessed=Tf * D * 4 + D * F * w_bytes + NC * Tf * F * 4,
    )
    h_parts = pl.pallas_call(
        fc1_kernel,
        out_shape=jax.ShapeDtypeStruct((NC, Tf, F), jnp.float32),
        grid_spec=pltpu.PrefetchScalarGridSpec(
            num_scalar_prefetch=0,
            grid=(NC, nk_per_core),
            in_specs=[
                pl.BlockSpec((Tf, tile_k),
                             lambda c, k: (0, c * nk_per_core + k)),      # x K-tile
                _maybe_buffered((tile_k, F),
                                lambda c, k: (c * nk_per_core + k, 0),
                                nk_per_core),                             # w1 K-tile
            ],
            out_specs=pl.BlockSpec((None, Tf, F), lambda c, k: (c, 0, 0)),  # resident acc
        ),
        compiler_params=pltpu.CompilerParams(
            dimension_semantics=("parallel", "arbitrary"),   # split K across 2 TCs (v7x)
            vmem_limit_bytes=32 * 1024 * 1024),
        cost_estimate=fc1_cost,
    )(x2d, w1)

    # --- fc2 + residual: out = yaw * relu(relu(sum(h)+b1) @ w2 + b2) + x -----
    fc2_cost = pl.CostEstimate(
        flops=2 * Tf * D * F + 4 * Tf * D,
        transcendentals=0,
        bytes_accessed=(F * D * w_bytes + D * 4 + Tf * D * 4 + Tf * D * 4
                        + NC * Tf * F * 4 + F * 4),
    )
    out2d = pl.pallas_call(
        fc2_kernel,
        out_shape=jax.ShapeDtypeStruct((Tf, D), jnp.float32),
        grid_spec=pltpu.PrefetchScalarGridSpec(
            num_scalar_prefetch=0,
            grid=(nd,),
            in_specs=[
                pl.BlockSpec(memory_space=pltpu.SMEM),               # yaw scalar
                pl.BlockSpec((NC, Tf, F), lambda j: (0, 0, 0)),      # h partials (tiny)
                pl.BlockSpec((1, F), lambda j: (0, 0)),              # b1
                _maybe_buffered((F, tile_d), lambda j: (0, j), nd),  # w2 tile
                pl.BlockSpec((1, tile_d), lambda j: (0, j)),         # b2 tile
                pl.BlockSpec((Tf, tile_d), lambda j: (0, j)),        # x tile
            ],
            out_specs=pl.BlockSpec((Tf, tile_d), lambda j: (0, j)),
        ),
        compiler_params=pltpu.CompilerParams(
            dimension_semantics=("parallel",),   # independent D tiles -> 2 TCs on v7x
            vmem_limit_bytes=32 * 1024 * 1024),
        cost_estimate=fc2_cost,
    )(yaw2d, h_parts, b1_2d, w2, b2_2d, x2d)

    return out2d.reshape(Tf, Cf, Hf, Wf)


def branch_reference(in_x, yaw, in_y, w1, b1, w2, b2):
    """Pure-JAX f32 reference mirroring the PyTorch forward."""
    del in_y
    Tf, Cf, Hf, Wf = in_x.shape
    x = in_x.reshape(Tf, Cf * Hf * Wf)
    h = jnp.maximum(x @ w1 + b1, 0.0)
    y = jnp.maximum(h @ w2 + b2, 0.0)
    feat = yaw * y + x
    return feat.reshape(Tf, Cf, Hf, Wf)


if __name__ == "__main__":
    # Small shapes consistent with the forward pass: D = Cf*Hf*Wf.
    Tf, Cf, Hf, Wf = 2, 4, 16, 16
    D = Cf * Hf * Wf          # 1024 (original module uses 65536)
    feat_dim = 32

    key = jax.random.PRNGKey(0)
    k_x, k_y, k_w1, k_b1, k_w2, k_b2 = jax.random.split(key, 6)

    in_x = jax.random.normal(k_x, (Tf, Cf, Hf, Wf), jnp.float32)
    in_y = jax.random.normal(k_y, (Tf, Cf, Hf, Wf), jnp.float32)
    yaw = jnp.float32(0.7)

    # Deterministic torch-Linear-style init (uniform in +/- 1/sqrt(fan_in)),
    # weights stored pre-transposed for the kernel: w1 (D, F), w2 (F, D).
    bound1 = 1.0 / jnp.sqrt(jnp.float32(D))
    bound2 = 1.0 / jnp.sqrt(jnp.float32(feat_dim))
    w1 = jax.random.uniform(k_w1, (D, feat_dim), jnp.float32, -bound1, bound1)
    b1 = jax.random.uniform(k_b1, (feat_dim,), jnp.float32, -bound1, bound1)
    w2 = jax.random.uniform(k_w2, (feat_dim, D), jnp.float32, -bound2, bound2)
    b2 = jax.random.uniform(k_b2, (D,), jnp.float32, -bound2, bound2)

    # Persist the weights in bf16 ONCE, outside the jitted forward (no per-call
    # convert traffic; kernel streams half the weight bytes).
    w1_bf = jax.block_until_ready(w1.astype(jnp.bfloat16))
    w2_bf = jax.block_until_ready(w2.astype(jnp.bfloat16))

    out = branch_forward(in_x, yaw, in_y, w1_bf, b1, w2_bf, b2)
    out = jax.block_until_ready(out)

    ref = branch_reference(in_x, yaw, in_y, w1, b1, w2, b2)
    assert out.shape == (Tf, Cf, Hf, Wf)
    # bf16-quantized weights (f32 activations/accumulation) -> relaxed tolerance.
    assert jnp.allclose(out, ref, atol=2e-2, rtol=2e-2), "mismatch vs reference"

    print("KERNEL_OK")
</pallas_src>

<mosaic_0001>
module attributes {stable_mosaic.version = 11 : i64} {
  func.func @fc2_kernel(%arg0: i32, %arg1: memref<1x1xf32, #tpu.memory_space<smem>>, %arg2: memref<2x2x32xf32, #tpu.memory_space<vmem>>, %arg3: memref<1x32xf32, #tpu.memory_space<vmem>>, %arg4: memref<32x512xbf16, #tpu.memory_space<vmem>>, %arg5: memref<1x512xf32, #tpu.memory_space<vmem>>, %arg6: memref<2x512xf32, #tpu.memory_space<vmem>>, %arg7: memref<2x512xf32, #tpu.memory_space<vmem>>) attributes {dimension_semantics = [#tpu.dimension_semantics<parallel>], iteration_bounds = array<i64: 2>, scalar_prefetch = 0 : i64, scratch_operands = 0 : i64, tpu.core_type = #tpu.core_type<tc>, window_params = [{transform_indices = @transform_0, window_bounds = array<i64: 1, 1>}, {pipeline_mode = #tpu.pipeline_mode<synchronous>, transform_indices = @transform_1, window_bounds = array<i64: 2, 2, 32>}, {pipeline_mode = #tpu.pipeline_mode<synchronous>, transform_indices = @transform_2, window_bounds = array<i64: 1, 32>}, {transform_indices = @transform_3, window_bounds = array<i64: 32, 512>}, {transform_indices = @transform_4, window_bounds = array<i64: 1, 512>}, {transform_indices = @transform_5, window_bounds = array<i64: 2, 512>}, {transform_indices = @transform_6, window_bounds = array<i64: 2, 512>}]} {
    %c0 = arith.constant 0 : index
    %c0_0 = arith.constant 0 : index
    %c0_1 = arith.constant 0 : index
    %0 = vector.load %arg2[%c0, %c0_0, %c0_1] : memref<2x2x32xf32, #tpu.memory_space<vmem>>, vector<1x2x32xf32>
    %1 = vector.shape_cast %0 : vector<1x2x32xf32> to vector<2x32xf32>
    %c1 = arith.constant 1 : index
    %c0_2 = arith.constant 0 : index
    %c0_3 = arith.constant 0 : index
    %2 = vector.load %arg2[%c1, %c0_2, %c0_3] : memref<2x2x32xf32, #tpu.memory_space<vmem>>, vector<1x2x32xf32>
    %3 = vector.shape_cast %2 : vector<1x2x32xf32> to vector<2x32xf32>
    %4 = arith.addf %1, %3 : vector<2x32xf32>
    %c0_4 = arith.constant 0 : index
    %c0_5 = arith.constant 0 : index
    %5 = vector.load %arg3[%c0_4, %c0_5] : memref<1x32xf32, #tpu.memory_space<vmem>>, vector<1x32xf32>
    %6 = vector.broadcast %5 : vector<1x32xf32> to vector<2x32xf32>
    %7 = arith.addf %4, %6 : vector<2x32xf32>
    %cst = arith.constant 0.000000e+00 : f32
    %8 = vector.broadcast %cst : f32 to vector<2x32xf32>
    %9 = arith.maximumf %7, %8 : vector<2x32xf32>
    %c0_6 = arith.constant 0 : index
    %c0_7 = arith.constant 0 : index
    %10 = vector.load %arg4[%c0_6, %c0_7] : memref<32x512xbf16, #tpu.memory_space<vmem>>, vector<32x512xbf16>
    %11 = arith.extf %10 : vector<32x512xbf16> to vector<32x512xf32>
    %cst_8 = arith.constant dense<0.000000e+00> : vector<2x512xf32>
    %12 = tpu.matmul %9, %11, %cst_8 {dimension_numbers = #tpu.dot_dimension_numbers<[1], [0], [0], [1], [0, 0, 1, 1], [], []>} : vector<2x32xf32>, vector<32x512xf32>, vector<2x512xf32> -> vector<2x512xf32>
    %c0_9 = arith.constant 0 : index
    %c0_10 = arith.constant 0 : index
    %13 = vector.load %arg5[%c0_9, %c0_10] : memref<1x512xf32, #tpu.memory_space<vmem>>, vector<1x512xf32>
    %14 = vector.broadcast %13 : vector<1x512xf32> to vector<2x512xf32>
    %15 = arith.addf %12, %14 : vector<2x512xf32>
    %cst_11 = arith.constant 0.000000e+00 : f32
    %16 = vector.broadcast %cst_11 : f32 to vector<2x512xf32>
    %17 = arith.maximumf %15, %16 : vector<2x512xf32>
    %c0_12 = arith.constant 0 : index
    %c0_13 = arith.constant 0 : index
    %18 = memref.load %arg1[%c0_12, %c0_13] : memref<1x1xf32, #tpu.memory_space<smem>>
    %19 = vector.broadcast %18 : f32 to vector<2x512xf32>
    %20 = arith.mulf %19, %17 : vector<2x512xf32>
    %c0_14 = arith.constant 0 : index
    %c0_15 = arith.constant 0 : index
    %21 = vector.load %arg6[%c0_14, %c0_15] : memref<2x512xf32, #tpu.memory_space<vmem>>, vector<2x512xf32>
    %22 = arith.addf %20, %21 : vector<2x512xf32>
    %c0_16 = arith.constant 0 : index
    %c0_17 = arith.constant 0 : index
    %23 = vector.load %arg7[%c0_16, %c0_17] : memref<2x512xf32, #tpu.memory_space<vmem>>, vector<2x512xf32>
    tpu.vector_store %arg7[%c0_16, %c0_17], %22 {strides = array<i32>} : memref<2x512xf32, #tpu.memory_space<vmem>>, vector<2x512xf32>,
    return
  }
  func.func @transform_0(%arg0: i32) -> (i32, i32) {
    %c0_i32 = arith.constant 0 : i32
    %c0_i32_0 = arith.constant 0 : i32
    %c0_i32_1 = arith.constant 0 : i32
    return %c0_i32, %c0_i32_0 : i32, i32
  }
  func.func @transform_1(%arg0: i32) -> (i32, i32, i32) {
    %c0_i32 = arith.constant 0 : i32
    %c0_i32_0 = arith.constant 0 : i32
    %c0_i32_1 = arith.constant 0 : i32
    %c0_i32_2 = arith.constant 0 : i32
    return %c0_i32, %c0_i32_0, %c0_i32_1 : i32, i32, i32
  }
  func.func @transform_2(%arg0: i32) -> (i32, i32) {
    %c0_i32 = arith.constant 0 : i32
    %c0_i32_0 = arith.constant 0 : i32
    %c0_i32_1 = arith.constant 0 : i32
    return %c0_i32, %c0_i32_0 : i32, i32
  }
  func.func @transform_3(%arg0: i32) -> (i32, i32) {
    %c0_i32 = arith.constant 0 : i32
    %c0_i32_0 = arith.constant 0 : i32
    return %c0_i32, %arg0 : i32, i32
  }
  func.func @transform_4(%arg0: i32) -> (i32, i32) {
    %c0_i32 = arith.constant 0 : i32
    %c0_i32_0 = arith.constant 0 : i32
    return %c0_i32, %arg0 : i32, i32
  }
  func.func @transform_5(%arg0: i32) -> (i32, i32) {
    %c0_i32 = arith.constant 0 : i32
    %c0_i32_0 = arith.constant 0 : i32
    return %c0_i32, %arg0 : i32, i32
  }
  func.func @transform_6(%arg0: i32) -> (i32, i32) {
    %c0_i32 = arith.constant 0 : i32
    %c0_i32_0 = arith.constant 0 : i32
    return %c0_i32, %arg0 : i32, i32
  }
}

module attributes {stable_mosaic.version = 11 : i64} {
  func.func @fc1_kernel(%arg0: i32, %arg1: i32, %arg2: memref<2x512xf32, #tpu.memory_space<vmem>>, %arg3: memref<512x32xbf16, #tpu.memory_space<vmem>>, %arg4: memref<1x2x32xf32, #tpu.memory_space<vmem>>) attributes {dimension_semantics = [#tpu.dimension_semantics<parallel>, #tpu.dimension_semantics<arbitrary>], iteration_bounds = array<i64: 2, 1>, scalar_prefetch = 0 : i64, scratch_operands = 0 : i64, tpu.core_type = #tpu.core_type<tc>, window_params = [{transform_indices = @transform_0, window_bounds = array<i64: 2, 512>}, {transform_indices = @transform_1, window_bounds = array<i64: 512, 32>}, {transform_indices = @transform_2, window_bounds = array<i64: 1, 2, 32>}]} {
    %c0_i32 = arith.constant 0 : i32
    %0 = arith.cmpi eq, %arg1, %c0_i32 : i32
    %1 = arith.extui %0 : i1 to i32
    %c0_i32_0 = arith.constant 0 : i32
    %2 = arith.cmpi ne, %1, %c0_i32_0 : i32
    scf.if %2 {
      %cst_10 = arith.constant 0.000000e+00 : f32
      %13 = vector.broadcast %cst_10 : f32 to vector<2x32xf32>
      %c0_11 = arith.constant 0 : index
      %c0_12 = arith.constant 0 : index
      %c0_13 = arith.constant 0 : index
      %14 = vector.load %arg4[%c0_11, %c0_12, %c0_13] : memref<1x2x32xf32, #tpu.memory_space<vmem>>, vector<1x2x32xf32>
      %15 = vector.shape_cast %14 : vector<1x2x32xf32> to vector<2x32xf32>
      %16 = vector.shape_cast %13 : vector<2x32xf32> to vector<1x2x32xf32>
      tpu.vector_store %arg4[%c0_11, %c0_12, %c0_13], %16 {strides = array<i32>} : memref<1x2x32xf32, #tpu.memory_space<vmem>>, vector<1x2x32xf32>,
    } else {
    }
    %c0 = arith.constant 0 : index
    %c0_1 = arith.constant 0 : index
    %c0_2 = arith.constant 0 : index
    %3 = vector.load %arg4[%c0, %c0_1, %c0_2] : memref<1x2x32xf32, #tpu.memory_space<vmem>>, vector<1x2x32xf32>
    %4 = vector.shape_cast %3 : vector<1x2x32xf32> to vector<2x32xf32>
    %c0_3 = arith.constant 0 : index
    %c0_4 = arith.constant 0 : index
    %5 = vector.load %arg2[%c0_3, %c0_4] : memref<2x512xf32, #tpu.memory_space<vmem>>, vector<2x512xf32>
    %c0_5 = arith.constant 0 : index
    %c0_6 = arith.constant 0 : index
    %6 = vector.load %arg3[%c0_5, %c0_6] : memref<512x32xbf16, #tpu.memory_space<vmem>>, vector<512x32xbf16>
    %7 = arith.extf %6 : vector<512x32xbf16> to vector<512x32xf32>
    %cst = arith.constant dense<0.000000e+00> : vector<2x32xf32>
    %8 = tpu.matmul %5, %7, %cst {dimension_numbers = #tpu.dot_dimension_numbers<[1], [0], [0], [1], [0, 0, 1, 1], [], []>} : vector<2x512xf32>, vector<512x32xf32>, vector<2x32xf32> -> vector<2x32xf32>
    %9 = arith.addf %4, %8 : vector<2x32xf32>
    %c0_7 = arith.constant 0 : index
    %c0_8 = arith.constant 0 : index
    %c0_9 = arith.constant 0 : index
    %10 = vector.load %arg4[%c0_7, %c0_8, %c0_9] : memref<1x2x32xf32, #tpu.memory_space<vmem>>, vector<1x2x32xf32>
    %11 = vector.shape_cast %10 : vector<1x2x32xf32> to vector<2x32xf32>
    %12 = vector.shape_cast %9 : vector<2x32xf32> to vector<1x2x32xf32>
    tpu.vector_store %arg4[%c0_7, %c0_8, %c0_9], %12 {strides = array<i32>} : memref<1x2x32xf32, #tpu.memory_space<vmem>>, vector<1x2x32xf32>,
    return
  }
  func.func @transform_0(%arg0: i32, %arg1: i32) -> (i32, i32) {
    %c1_i32 = arith.constant 1 : i32
    %0 = arith.muli %arg0, %c1_i32 : i32
    %1 = arith.addi %0, %arg1 : i32
    %c0_i32 = arith.constant 0 : i32
    %c0_i32_0 = arith.constant 0 : i32
    return %c0_i32, %1 : i32, i32
  }
  func.func @transform_1(%arg0: i32, %arg1: i32) -> (i32, i32) {
    %c1_i32 = arith.constant 1 : i32
    %0 = arith.muli %arg0, %c1_i32 : i32
    %1 = arith.addi %0, %arg1 : i32
    %c0_i32 = arith.constant 0 : i32
    %c0_i32_0 = arith.constant 0 : i32
    return %1, %c0_i32 : i32, i32
  }
  func.func @transform_2(%arg0: i32, %arg1: i32) -> (i32, i32, i32) {
    %c0_i32 = arith.constant 0 : i32
    %c0_i32_0 = arith.constant 0 : i32
    %c0_i32_1 = arith.constant 0 : i32
    return %arg0, %c0_i32, %c0_i32_0 : i32, i32, i32
  }
}

</mosaic_0001>

<llo_original>
// kernel: branch_forward.3
$region0: #{branch_forward.3}
  #allocation0 [shape = 'u32[]', space=smem, size = 0x4, offset = 0x4, fixed_abs, tag = 'smem constant byte address 0x4 - core index']
  #allocation1 [shape = 'u32[144,128]{1,0:T(1,128)}', space=vmem, size = 0x12000, scoped, tag = 'internal scratch']
  #allocation2 [shape = 'f32[1,1]{1,0:T(1,128)S(6)}', space=smem, size = 0x200, scoped, tag = 'scoped memory for branch_forward.3']
  %s0 = inlined_call_operand.<no memory space> [shape: f32[1,1], index: 0, kind: input, shape index: {}]
  %s1 = inlined_call_operand.vmem [shape: f32[2,2,32], index: 1, kind: input, shape index: {}]
  %s2 = inlined_call_operand.vmem [shape: f32[1,32], index: 2, kind: input, shape index: {}]
  %s3 = inlined_call_operand.vmem [shape: bf16[32,1024], index: 3, kind: input, shape index: {}]
  %s4 = inlined_call_operand.vmem [shape: f32[1,1024], index: 4, kind: input, shape index: {}]
  %s5 = inlined_call_operand.vmem [shape: f32[2,1024], index: 5, kind: input, shape index: {}]
  %s6 = inlined_call_operand.vmem [shape: f32[2,1024], index: 6, kind: output, shape index: {}]
  %s7 = sld [smem:[#allocation0]]
  $region80: #{branch_forward.3} parent=0
    _
  %s9 = ssub.s32 1, %s7
  %s10 = scalar_select 0, %s9, %s7
  %11 = sst [smem:[#allocation2]] %s0
  $region1: #{branch_forward.3} parent=0
    #allocation3 [shape = 'u8[65536]{0}', space=vmem, size = 0x10000, scoped, tag = 'input window, operand 3']
    loop: start=0, step=1, limit=4
    $region2: #{branch_forward.3} parent=1 // loop_pre_header
      _
    $region3: #{branch_forward.3} parent=1 // loop_header
      %s13 = sphi 0, %s17
      %p14 = scmp.ge.s32.totalorder %s13, 4
      %s21 = sphi 0, %s21
      %s23 = sphi 0, %s21
      %s24 = sphi 0, %s23
      %s38 = sphi 0, %s24
      %s42 = sphi 0, %s42
      %s44 = sphi 0, %s42
      %s45 = sphi 0, %s44
      %s59 = sphi 0, %s45
      %s63 = sphi 0, %s63
      %s65 = sphi 0, %s63
      %s66 = sphi 0, %s65
      %s80 = sphi 0, %s66
      %s86 = sphi 0, %s88
      %s89 = sphi 0, %s86
      %s90 = sphi 0, %s89
      %s106 = sphi 0, %s90
      %s112 = sphi 0, %s114
      %s115 = sphi 0, %s112
      %s116 = sphi 0, %s115
      %s132 = sphi 0, %s116
      %s138 = sphi 0, %s140
      %s141 = sphi 0, %s138
      %s142 = sphi 0, %s141
      %s158 = sphi 0, %s142
      %s164 = sphi 0, %s166
      %s167 = sphi 0, %s164
      %s168 = sphi 0, %s167
      %s184 = sphi 0, %s168
    $region4: #{branch_forward.3} parent=1 // loop_header_branch
      %16 = sbr.rel (%p14) target = $region8
    $region5: #{branch_forward.3} parent=1 // loop_body
      %s18 = ssub.s32 %s13, 1
      %s19 = ssub.s32 %s13, 2
      %s20 = sadd.s32 %s13, 1
      %s22 = sadd.s32 %s21, 1
      %p25 = scmp.eq.s32.totalorder %s13, 1
      %p26 = scmp.ne.s32.totalorder %s21, %s23
      %p27 = scmp.eq.s32.totalorder %s13, 0
      %p28 = por %p26, %p27
      %p29 = scmp.ne.s32.totalorder %s21, %s23
      %p30 = scmp.eq.s32.totalorder %s18, 1
      %p31 = por %p29, %p30
      %p32 = scmp.ne.s32.totalorder %s23, %s24
      %p33 = scmp.eq.s32.totalorder %s18, 0
      %p34 = por %p32, %p33
      %p35 = scmp.ne.s32.totalorder %s23, %s24
      %p36 = scmp.eq.s32.totalorder %s19, 1
      %p37 = por %p35, %p36
      %p39 = scmp.ne.s32.totalorder %s24, %s38
      %p40 = scmp.eq.s32.totalorder %s19, 0
      %p41 = por %p39, %p40
      %s43 = sadd.s32 %s42, 1
      %p46 = scmp.eq.s32.totalorder %s13, 1
      %p47 = scmp.ne.s32.totalorder %s42, %s44
      %p48 = scmp.eq.s32.totalorder %s13, 0
      %p49 = por %p47, %p48
      %p50 = scmp.ne.s32.totalorder %s42, %s44
      %p51 = scmp.eq.s32.totalorder %s18, 1
      %p52 = por %p50, %p51
      %p53 = scmp.ne.s32.totalorder %s44, %s45
      %p54 = scmp.eq.s32.totalorder %s18, 0
      %p55 = por %p53, %p54
      %p56 = scmp.ne.s32.totalorder %s44, %s45
      %p57 = scmp.eq.s32.totalorder %s19, 1
      %p58 = por %p56, %p57
      %p60 = scmp.ne.s32.totalorder %s45, %s59
      %p61 = scmp.eq.s32.totalorder %s19, 0
      %p62 = por %p60, %p61
      %s64 = sadd.s32 %s63, 1
      %p67 = scmp.eq.s32.totalorder %s13, 1
      %p68 = scmp.ne.s32.totalorder %s63, %s65
      %p69 = scmp.eq.s32.totalorder %s13, 0
      %p70 = por %p68, %p69
      %p71 = scmp.ne.s32.totalorder %s63, %s65
      %p72 = scmp.eq.s32.totalorder %s18, 1
      %p73 = por %p71, %p72
      %p74 = scmp.ne.s32.totalorder %s65, %s66
      %p75 = scmp.eq.s32.totalorder %s18, 0
      %p76 = por %p74, %p75
      %p77 = scmp.ne.s32.totalorder %s65, %s66
      %p78 = scmp.eq.s32.totalorder %s19, 1
      %p79 = por %p77, %p78
      %p81 = scmp.ne.s32.totalorder %s66, %s80
      %p82 = scmp.eq.s32.totalorder %s19, 0
      %p83 = por %p81, %p82
      %s84 = ssub.s32 %s13, %s20
      %p85 = scmp.eq.s32.totalorder %s84, 0
      %s87 = sadd.s32 %s86, 1
      %s88 = scalar_select %p85, %s86, %s87
      %p91 = pneg %p85
      %p92 = scmp.eq.s32.totalorder %s13, 1
      %p93 = por %p91, %p92
      %p94 = scmp.ne.s32.totalorder %s86, %s89
      %p95 = scmp.eq.s32.totalorder %s13, 0
      %p96 = por %p94, %p95
      %p97 = scmp.ne.s32.totalorder %s86, %s89
      %p98 = scmp.eq.s32.totalorder %s18, 1
      %p99 = por %p97, %p98
      %p100 = scmp.ne.s32.totalorder %s89, %s90
      %p101 = scmp.eq.s32.totalorder %s18, 0
      %p102 = por %p100, %p101
      %p103 = scmp.ne.s32.totalorder %s89, %s90
      %p104 = scmp.eq.s32.totalorder %s19, 1
      %p105 = por %p103, %p104
      %p107 = scmp.ne.s32.totalorder %s90, %s106
      %p108 = scmp.eq.s32.totalorder %s19, 0
      %p109 = por %p107, %p108
      %s110 = ssub.s32 %s13, %s20
      %p111 = scmp.eq.s32.totalorder %s110, 0
      %s113 = sadd.s32 %s112, 1
      %s114 = scalar_select %p111, %s112, %s113
      %p117 = pneg %p111
      %p118 = scmp.eq.s32.totalorder %s13, 1
      %p119 = por %p117, %p118
      %p120 = scmp.ne.s32.totalorder %s112, %s115
      %p121 = scmp.eq.s32.totalorder %s13, 0
      %p122 = por %p120, %p121
      %p123 = scmp.ne.s32.totalorder %s112, %s115
      %p124 = scmp.eq.s32.totalorder %s18, 1
      %p125 = por %p123, %p124
      %p126 = scmp.ne.s32.totalorder %s115, %s116
      %p127 = scmp.eq.s32.totalorder %s18, 0
      %p128 = por %p126, %p127
      %p129 = scmp.ne.s32.totalorder %s115, %s116
      %p130 = scmp.eq.s32.totalorder %s19, 1
      %p131 = por %p129, %p130
      %p133 = scmp.ne.s32.totalorder %s116, %s132
      %p134 = scmp.eq.s32.totalorder %s19, 0
      %p135 = por %p133, %p134
      %s136 = ssub.s32 %s13, %s20
      %p137 = scmp.eq.s32.totalorder %s136, 0
      %s139 = sadd.s32 %s138, 1
      %s140 = scalar_select %p137, %s138, %s139
      %p143 = pneg %p137
      %p144 = scmp.eq.s32.totalorder %s13, 1
      %p145 = por %p143, %p144
      %p146 = scmp.ne.s32.totalorder %s138, %s141
      %p147 = scmp.eq.s32.totalorder %s13, 0
      %p148 = por %p146, %p147
      %p149 = scmp.ne.s32.totalorder %s138, %s141
      %p150 = scmp.eq.s32.totalorder %s18, 1
      %p151 = por %p149, %p150
      %p152 = scmp.ne.s32.totalorder %s141, %s142
      %p153 = scmp.eq.s32.totalorder %s18, 0
      %p154 = por %p152, %p153
      %p155 = scmp.ne.s32.totalorder %s141, %s142
      %p156 = scmp.eq.s32.totalorder %s19, 1
      %p157 = por %p155, %p156
      %p159 = scmp.ne.s32.totalorder %s142, %s158
      %p160 = scmp.eq.s32.totalorder %s19, 0
      %p161 = por %p159, %p160
      %s162 = ssub.s32 %s13, %s20
      %p163 = scmp.eq.s32.totalorder %s162, 0
      %s165 = sadd.s32 %s164, 1
      %s166 = scalar_select %p163, %s164, %s165
      %p169 = pneg %p163
      %p170 = scmp.eq.s32.totalorder %s13, 1
      %p171 = por %p169, %p170
      %p172 = scmp.ne.s32.totalorder %s164, %s167
      %p173 = scmp.eq.s32.totalorder %s13, 0
      %p174 = por %p172, %p173
      %p175 = scmp.ne.s32.totalorder %s164, %s167
      %p176 = scmp.eq.s32.totalorder %s18, 1
      %p177 = por %p175, %p176
      %p178 = scmp.ne.s32.totalorder %s167, %s168
      %p179 = scmp.eq.s32.totalorder %s18, 0
      %p180 = por %p178, %p179
      %p181 = scmp.ne.s32.totalorder %s167, %s168
      %p182 = scmp.eq.s32.totalorder %s19, 1
      %p183 = por %p181, %p182
      %p185 = scmp.ne.s32.totalorder %s168, %s184
      %p186 = scmp.eq.s32.totalorder %s19, 0
      %p187 = por %p185, %p186
      %p188 = scmp.le.s32.totalorder 1, %s13
      %p189 = scmp.lt.s32.totalorder %s13, 3
      %p190 = pnand %p188, %p189
      %p191 = pneg %p190
      // Predicated region
      $region9: #{branch_forward.3} parent=5 // pred_check
        _
      $region10: #{branch_forward.3} parent=5 // pred_check_branch
        %193 = sbr.rel (%p190) target = $region12
      $region11: #{branch_forward.3} parent=5 // pred_region
        %s194 = ssub.s32 %s13, 1
        // Predicated region
        $region13: #{branch_forward.3} parent=11 // pred_check
          %p195 = pneg %p34
        $region14: #{branch_forward.3} parent=11 // pred_check_branch
          %197 = sbr.rel (%p195) target = $region16
        $region15: #{branch_forward.3} parent=11 // pred_region
          _
        $region16: #{branch_forward.3} parent=11 // pred_fallthru
          _
        // Predicated region
        $region17: #{branch_forward.3} parent=11 // pred_check
          %p198 = pneg %p55
        $region18: #{branch_forward.3} parent=11 // pred_check_branch
          %200 = sbr.rel (%p198) target = $region20
        $region19: #{branch_forward.3} parent=11 // pred_region
          _
        $region20: #{branch_forward.3} parent=11 // pred_fallthru
          _
        // Predicated region
        $region21: #{branch_forward.3} parent=11 // pred_check
          %p201 = pneg %p76
        $region22: #{branch_forward.3} parent=11 // pred_check_branch
          %203 = sbr.rel (%p201) target = $region24
        $region23: #{branch_forward.3} parent=11 // pred_region
          _
        $region24: #{branch_forward.3} parent=11 // pred_fallthru
          _
      $region12: #{branch_forward.3} parent=5 // pred_fallthru
        _
      %p204 = scmp.lt.s32.totalorder %s13, 2
      // Predicated region
      $region25: #{branch_forward.3} parent=5 // pred_check
        %p205 = pneg %p204
      $region26: #{branch_forward.3} parent=5 // pred_check_branch
        %207 = sbr.rel (%p205) target = $region28
      $region27: #{branch_forward.3} parent=5 // pred_region
        // Predicated region
        $region29: #{branch_forward.3} parent=27 // pred_check
          %p208 = pneg %p96
        $region30: #{branch_forward.3} parent=27 // pred_check_branch
          %210 = sbr.rel (%p208) target = $region32
        $region31: #{branch_forward.3} parent=27 // pred_region
          %s211 = sand.u32 %s86, 1
          %s212 = sand.u32 %s86, 1
          %s213 = smul.addr %s212, 64
          %s214 = scalar_lea.vmem [#allocation3], %s213
          %s215 = smul.u32 4, %s13
          %s216 = smul.addr %s215, 4
          %s217 = scalar_lea.vmem %s3, %s216
          // Predicated region
          $region33: #{branch_forward.3} parent=31 // pred_check
            _
          $region34: #{branch_forward.3} parent=31 // pred_check_branch
            %219 = sbr.rel (0) target = $region36
          $region35: #{branch_forward.3} parent=31 // pred_region
            // Predicated region
            $region37: #{branch_forward.3} parent=35 // pred_check
              _
            $region38: #{branch_forward.3} parent=35 // pred_check_branch
              %221 = sbr.rel (0) target = $region40
            $region39: #{branch_forward.3} parent=35 // pred_region
              loop: start=0, step=1, limit=1
              $region41: #{branch_forward.3} parent=39 // loop_pre_header
                _
              $region42: #{branch_forward.3} parent=39 // loop_header
                %s223 = sphi 0, %s227
                %p224 = scmp.ge.s32.totalorder %s223, 1
                %s228 = sphi %s217, %s217
                %s229 = sphi %s214, %s214
              $region43: #{branch_forward.3} parent=39 // loop_header_branch
                %226 = sbr.rel (%p224) target = $region47
              $region44: #{branch_forward.3} parent=39 // loop_body
                %v230 = vld [vmem:[%s228] sm:$0xff]
                %231 = vst [vmem:[%s229] sm:$0xff] %v230
                %v232 = vld [vmem:[%s228 + $0x8] sm:$0xff]
                %233 = vst [vmem:[%s229 + $0x8] sm:$0xff] %v232
                %v234 = vld [vmem:[%s228 + $0x20] sm:$0xff]
                %235 = vst [vmem:[%s229 + $0x10] sm:$0xff] %v234
                %v236 = vld [vmem:[%s228 + $0x28] sm:$0xff]
                %237 = vst [vmem:[%s229 + $0x18] sm:$0xff] %v236
                %v238 = vld [vmem:[%s228 + $0x40] sm:$0xff]
                %239 = vst [vmem:[%s229 + $0x20] sm:$0xff] %v238
                %v240 = vld [vmem:[%s228 + $0x48] sm:$0xff]
                %241 = vst [vmem:[%s229 + $0x28] sm:$0xff] %v240
                %v242 = vld [vmem:[%s228 + $0x60] sm:$0xff]
                %243 = vst [vmem:[%s229 + $0x30] sm:$0xff] %v242
                %v244 = vld [vmem:[%s228 + $0x68] sm:$0xff]
                %245 = vst [vmem:[%s229 + $0x38] sm:$0xff] %v244
              $region45: #{branch_forward.3} parent=39 // loop_footer
                %s227 = sadd.s32 1, %s223
              $region46: #{branch_forward.3} parent=39 // loop_footer_branch
                %222 = sbr.rel target = $region42
              $region47: #{branch_forward.3} parent=39 // loop_exit
                _
            $region40: #{branch_forward.3} parent=35 // pred_fallthru
              _
            // Predicated region
            $region48: #{branch_forward.3} parent=35 // pred_check
              _
            $region49: #{branch_forward.3} parent=35 // pred_check_branch
              %247 = sbr.rel target = $region51
            $region50: #{branch_forward.3} parent=35 // pred_region
              _
            $region51: #{branch_forward.3} parent=35 // pred_fallthru
              _
          $region36: #{branch_forward.3} parent=31 // pred_fallthru
            _
          %248 = vnop
        $region32: #{branch_forward.3} parent=27 // pred_fallthru
          _
        // Predicated region
        $region52: #{branch_forward.3} parent=27 // pred_check
          %p249 = pneg %p122
        $region53: #{branch_forward.3} parent=27 // pred_check_branch
          %251 = sbr.rel (%p249) target = $region55
        $region54: #{branch_forward.3} parent=27 // pred_region
          %s252 = smul.u32 4, %s13
          %p253 = scmp.lt.s32.totalorder %s252, 7
          %s254 = scalar_select %p253, %s252, 7
          %s255 = scalar_lea.vmem %s4, %s254
          %s256 = smul.u32 4, %s13
        $region55: #{branch_forward.3} parent=27 // pred_fallthru
          _
        // Predicated region
        $region56: #{branch_forward.3} parent=27 // pred_check
          %p257 = pneg %p148
        $region57: #{branch_forward.3} parent=27 // pred_check_branch
          %259 = sbr.rel (%p257) target = $region59
        $region58: #{branch_forward.3} parent=27 // pred_region
          %s260 = smul.u32 4, %s13
          %p261 = scmp.lt.s32.totalorder %s260, 7
          %s262 = scalar_select %p261, %s260, 7
          %s263 = smul.addr %s262, 2
          %s264 = scalar_lea.vmem %s5, %s263
          %s265 = smul.u32 4, %s13
        $region59: #{branch_forward.3} parent=27 // pred_fallthru
          _
      $region28: #{branch_forward.3} parent=5 // pred_fallthru
        _
      %p266 = scmp.le.s32.totalorder 1, %s13
      %p267 = scmp.lt.s32.totalorder %s13, 3
      %p268 = pnand %p266, %p267
      %p269 = pneg %p268
      // Predicated region
      $region60: #{branch_forward.3} parent=5 // pred_check
        _
      $region61: #{branch_forward.3} parent=5 // pred_check_branch
        %271 = sbr.rel (%p268) target = $region63
      $region62: #{branch_forward.3} parent=5 // pred_region
        %s272 = ssub.s32 %s13, 1
        %s273 = sand.u32 %s89, 1
        %s274 = sand.u32 %s89, 1
        %s275 = smul.addr %s274, 64
        %s276 = scalar_lea.vmem [#allocation3], %s275
        // Predicated region
        $region64: #{branch_forward.3} parent=62 // pred_check
          %p277 = pneg %p102
        $region65: #{branch_forward.3} parent=62 // pred_check_branch
          %279 = sbr.rel (%p277) target = $region67
        $region66: #{branch_forward.3} parent=62 // pred_region
          _
        $region67: #{branch_forward.3} parent=62 // pred_fallthru
          _
        %p280 = pneg %p34
        %p281 = pneg %p31
        %p282 = pneg %p55
        %p283 = pneg %p52
        %p284 = pneg %p76
        %p285 = pneg %p73
        %s286 = sand.u32 %s89, 1
        %s287 = sand.u32 %s89, 1
        %s288 = smul.addr %s287, 64
        %s289 = scalar_lea.vmem [#allocation3], %s288
        %p290 = pneg %p102
        %p291 = pneg %p99
        %s292 = smul.u32 4, %s18
        %p293 = scmp.lt.s32.totalorder %s292, 7
        %s294 = scalar_select %p293, %s292, 7
        %s295 = scalar_lea.vmem %s4, %s294
        %p296 = pneg %p128
        %p297 = pneg %p125
        %s298 = smul.u32 4, %s18
        %p299 = scmp.lt.s32.totalorder %s298, 7
        %s300 = scalar_select %p299, %s298, 7
        %s301 = smul.addr %s300, 2
        %s302 = scalar_lea.vmem %s5, %s301
        %p303 = pneg %p154
        %p304 = pneg %p151
        %p305 = pneg %p180
        %p306 = pneg %p177
        %s307 = smul.u32 4, %s18
        %p308 = scmp.lt.s32.totalorder %s307, 7
        %s309 = scalar_select %p308, %s307, 7
        %s310 = smul.addr %s309, 2
        %s311 = scalar_lea.vmem %s6, %s310
        %s312 = smul.u32 4, %s18
        %s313 = smul.u32 4, %s18
        %p314 = scmp.lt.s32.totalorder %s313, 7
        %s315 = scalar_select %p314, %s313, 7
        %s316 = scalar_lea.vmem %s4, %s315
        %s317 = smul.u32 4, %s18
        %s318 = smul.u32 4, %s18
        %p319 = scmp.lt.s32.totalorder %s318, 7
        %s320 = scalar_select %p319, %s318, 7
        %s321 = smul.addr %s320, 2
        %s322 = scalar_lea.vmem %s5, %s321
        %s323 = smul.u32 4, %s18
        %s324 = smul.u32 4, %s18
        %p325 = scmp.lt.s32.totalorder %s324, 7
        %s326 = scalar_select %p325, %s324, 7
        %s327 = smul.addr %s326, 2
        %s328 = scalar_lea.vmem %s6, %s327
        %s329 = smul.u32 4, %s18
        %v330 = vld [vmem:[%s1] sm:$0x3]
        %s331 = scalar_lea.vmem %s1, 2
        %v332 = vld [vmem:[%s331] sm:$0x3]
        %v333 = vadd.f32 %v330, %v332
        %v334 = vld [vmem:[%s2] sm:$0x1]
        %v336 = vlaneseq
        %v337 = vshrl.u32 %v336, 7
        %v338 = vsub.s32 0, %v337
        %v339 = vrot.slane %v334, %v338
        %v341 = vadd.f32 %v333, %v339
        %v342 = vmax.f32 %v341, 0.0
        %v343 = vld [vmem:[%s276] sm:$0xff]
        %v344 = vld [vmem:[%s276 + $0x8] sm:$0xff]
        %v345 = vld [vmem:[%s276 + $0x10] sm:$0xff]
        %v346 = vld [vmem:[%s276 + $0x18] sm:$0xff]
        %v347 = vld [vmem:[%s276 + $0x20] sm:$0xff]
        %v348 = vld [vmem:[%s276 + $0x28] sm:$0xff]
        %v349 = vld [vmem:[%s276 + $0x30] sm:$0xff]
        %v350 = vld [vmem:[%s276 + $0x38] sm:$0xff]
        %v351 = vunpack.c.l.bf16 %v343
        %v352 = vunpack.c.h.bf16 %v343
        %v353 = vunpack.c.l.bf16 %v344
        %v354 = vunpack.c.h.bf16 %v344
        %v355 = vunpack.c.l.bf16 %v345
        %v356 = vunpack.c.h.bf16 %v345
        %v357 = vunpack.c.l.bf16 %v346
        %v358 = vunpack.c.h.bf16 %v346
        %v359 = vunpack.c.l.bf16 %v347
        %v360 = vunpack.c.h.bf16 %v347
        %v361 = vunpack.c.l.bf16 %v348
        %v362 = vunpack.c.h.bf16 %v348
        %v363 = vunpack.c.l.bf16 %v349
        %v364 = vunpack.c.h.bf16 %v349
        %v365 = vunpack.c.l.bf16 %v350
        %v366 = vunpack.c.h.bf16 %v350
        %v367 = vld [vmem:[%s316] sm:$0xf]
        %v369 = vlaneseq
        %v370 = vshrl.u32 %v369, 7
        %v371 = vsub.s32 0, %v370
        %v372 = vrot.slane %v367, %v371
        %v373 = vlaneseq
        %v374 = vshrl.u32 %v373, 7
        %v375 = vsub.s32 1, %v374
        %v376 = vrot.slane %v367, %v375
        %v377 = vlaneseq
        %v378 = vshrl.u32 %v377, 7
        %v379 = vsub.s32 2, %v378
        %v380 = vrot.slane %v367, %v379
        %v381 = vlaneseq
        %v382 = vshrl.u32 %v381, 7
        %v383 = vsub.s32 3, %v382
        %v384 = vrot.slane %v367, %v383
        %vm389 = vcmask 261120
        %v391 = vsel %vm389, %v342, 0
        %393 = vmatprep.subr.mxu0 %v352
        %394 = vmatpush1.msra.mxu0 %v351
        %395 = vmatprep.subr.mxu0 %v356
        %396 = vmatpush1.msra.mxu0 %v355
        %397 = vmatprep.subr.mxu0 %v360
        %398 = vmatpush1.msra.mxu0 %v359
        %399 = vmatprep.subr.mxu0 %v364
        %400 = vmatpush1.msra.mxu0 %v363
        %401 = vmatprep.subr.mxu0 0.0
        %402 = vmatpush1.msra.mxu0 0.0
        %403 = vmatprep.subr.mxu0 0.0
        %404 = vmatpush1.msra.mxu0 0.0
        %405 = vmatprep.subr.mxu0 0.0
        %406 = vmatpush1.msra.mxu0 0.0
        %407 = vmatprep.subr.mxu0 0.0
        %408 = vmatpush1.msra.mxu0 0.0
        %409 = vmatprep.subr.mxu0 0.0
        %410 = vmatpush1.msra.mxu0 0.0
        %411 = vmatprep.subr.mxu0 0.0
        %412 = vmatpush1.msra.mxu0 0.0
        %413 = vmatprep.subr.mxu0 0.0
        %414 = vmatpush1.msra.mxu0 0.0
        %415 = vmatprep.subr.mxu0 0.0
        %416 = vmatpush1.msra.mxu0 0.0
        %417 = vmatprep.subr.mxu0 0.0
        %418 = vmatpush1.msra.mxu0 0.0
        %419 = vmatprep.subr.mxu0 0.0
        %420 = vmatpush1.msra.mxu0 0.0
        %421 = vmatprep.subr.mxu0 0.0
        %422 = vmatpush1.msra.mxu0 0.0
        %423 = vmatprep.subr.mxu0 0.0
        %424 = vmatpush1.msra.mxu0 0.0
        %425 = vmatprep.subr.mxu0 0.0
        %426 = vmatpush1.msra.mxu0 0.0
        %427 = vmatprep.subr.mxu0 0.0
        %428 = vmatpush1.msra.mxu0 0.0
        %429 = vmatprep.subr.mxu0 0.0
        %430 = vmatpush1.msra.mxu0 0.0
        %431 = vmatprep.subr.mxu0 0.0
        %432 = vmatpush1.msra.mxu0 0.0
        %433 = vmatprep.subr.mxu0 0.0
        %434 = vmatpush1.msra.mxu0 0.0
        %435 = vmatprep.subr.mxu0 0.0
        %436 = vmatpush1.msra.mxu0 0.0
        %437 = vmatprep.subr.mxu0 0.0
        %438 = vmatpush1.msra.mxu0 0.0
        %439 = vmatprep.subr.mxu0 0.0
        %440 = vmatpush1.msra.mxu0 0.0
        %441 = vmatprep.subr.mxu0 0.0
        %442 = vmatpush1.msra.mxu0 0.0
        %443 = vmatprep.subr.mxu0 0.0
        %444 = vmatpush1.msra.mxu0 0.0
        %445 = vmatprep.subr.mxu0 0.0
        %446 = vmatpush1.msra.mxu0 0.0
        %447 = vmatprep.subr.mxu0 0.0
        %448 = vmatpush1.msra.mxu0 0.0
        %449 = vmatprep.subr.mxu0 0.0
        %450 = vmatpush1.msra.mxu0 0.0
        %451 = vmatprep.subr.mxu0 0.0
        %452 = vmatpush1.msra.mxu0 0.0
        %453 = vmatprep.subr.mxu0 0.0
        %454 = vmatpush1.msra.mxu0 0.0
        %455 = vmatprep.subr.mxu0 0.0
        %456 = vmatpush1.msra.mxu0 0.0
        %457 = vmatprep.mubr.f32.mxu0 0.0
        %458 = vmatmul.mubr.f32.gmra.mrb[0].mxu0 %v391
        %v459 = vpop.f32.mrb[0].mxu0
        %v460 = vadd.f32 %v372, %v459
        %v461 = vpop.f32.mrb[0].mxu0
        %v462 = vadd.f32 %v376, %v461
        %463 = vdwg.mxu0
        %464 = vmatprep.subr.mxu0 %v354
        %465 = vmatpush1.msra.mxu0 %v353
        %466 = vmatprep.subr.mxu0 %v358
        %467 = vmatpush1.msra.mxu0 %v357
        %468 = vmatprep.subr.mxu0 %v362
        %469 = vmatpush1.msra.mxu0 %v361
        %470 = vmatprep.subr.mxu0 %v366
        %471 = vmatpush1.msra.mxu0 %v365
        %472 = vmatprep.subr.mxu0 0.0
        %473 = vmatpush1.msra.mxu0 0.0
        %474 = vmatprep.subr.mxu0 0.0
        %475 = vmatpush1.msra.mxu0 0.0
        %476 = vmatprep.subr.mxu0 0.0
        %477 = vmatpush1.msra.mxu0 0.0
        %478 = vmatprep.subr.mxu0 0.0
        %479 = vmatpush1.msra.mxu0 0.0
        %480 = vmatprep.subr.mxu0 0.0
        %481 = vmatpush1.msra.mxu0 0.0
        %482 = vmatprep.subr.mxu0 0.0
        %483 = vmatpush1.msra.mxu0 0.0
        %484 = vmatprep.subr.mxu0 0.0
        %485 = vmatpush1.msra.mxu0 0.0
        %486 = vmatprep.subr.mxu0 0.0
        %487 = vmatpush1.msra.mxu0 0.0
        %488 = vmatprep.subr.mxu0 0.0
        %489 = vmatpush1.msra.mxu0 0.0
        %490 = vmatprep.subr.mxu0 0.0
        %491 = vmatpush1.msra.mxu0 0.0
        %492 = vmatprep.subr.mxu0 0.0
        %493 = vmatpush1.msra.mxu0 0.0
        %494 = vmatprep.subr.mxu0 0.0
        %495 = vmatpush1.msra.mxu0 0.0
        %496 = vmatprep.subr.mxu0 0.0
        %497 = vmatpush1.msra.mxu0 0.0
        %498 = vmatprep.subr.mxu0 0.0
        %499 = vmatpush1.msra.mxu0 0.0
        %500 = vmatprep.subr.mxu0 0.0
        %501 = vmatpush1.msra.mxu0 0.0
        %502 = vmatprep.subr.mxu0 0.0
        %503 = vmatpush1.msra.mxu0 0.0
        %504 = vmatprep.subr.mxu0 0.0
        %505 = vmatpush1.msra.mxu0 0.0
        %506 = vmatprep.subr.mxu0 0.0
        %507 = vmatpush1.msra.mxu0 0.0
        %508 = vmatprep.subr.mxu0 0.0
        %509 = vmatpush1.msra.mxu0 0.0
        %510 = vmatprep.subr.mxu0 0.0
        %511 = vmatpush1.msra.mxu0 0.0
        %512 = vmatprep.subr.mxu0 0.0
        %513 = vmatpush1.msra.mxu0 0.0
        %514 = vmatprep.subr.mxu0 0.0
        %515 = vmatpush1.msra.mxu0 0.0
        %516 = vmatprep.subr.mxu0 0.0
        %517 = vmatpush1.msra.mxu0 0.0
        %518 = vmatprep.subr.mxu0 0.0
        %519 = vmatpush1.msra.mxu0 0.0
        %520 = vmatprep.subr.mxu0 0.0
        %521 = vmatpush1.msra.mxu0 0.0
        %522 = vmatprep.subr.mxu0 0.0
        %523 = vmatpush1.msra.mxu0 0.0
        %524 = vmatprep.subr.mxu0 0.0
        %525 = vmatpush1.msra.mxu0 0.0
        %526 = vmatprep.subr.mxu0 0.0
        %527 = vmatpush1.msra.mxu0 0.0
        %528 = vmatprep.mubr.f32.mxu0 0.0
        %529 = vmatmul.mubr.f32.gmra.mrb[0].mxu0 %v391
        %v530 = vpop.f32.mrb[0].mxu0
        %v531 = vadd.f32 %v380, %v530
        %v532 = vpop.f32.mrb[0].mxu0
        %v533 = vadd.f32 %v384, %v532
        %534 = vdwg.mxu0
        %v535 = vmax.f32 %v460, 0.0
        %v536 = vmax.f32 %v462, 0.0
        %v537 = vmax.f32 %v531, 0.0
        %v538 = vmax.f32 %v533, 0.0
        %s539 = sld [smem:[#allocation2]]
        %v540 = vstv %s539
        %v541 = vmul.f32 %v540, %v535
        %v542 = vmul.f32 %v540, %v536
        %v543 = vmul.f32 %v540, %v537
        %v544 = vmul.f32 %v540, %v538
        %v545 = vld [vmem:[%s322] sm:$0xff]
        %v547 = vcombine.high %v545, %v545
        %v549 = vunpack.c.l.s4 1983009808
        %v550 = vunpack.c.0.s8 %v549
        %v551 = vlaneseq
        %v552 = vshrl.u32 %v551, 7
        %v553 = vsub.s32 %v550, %v552
        %v554 = vrot.slane %v545, %v553
        %v556 = vunpack.c.l.s4 1983009808
        %v557 = vunpack.c.0.s8 %v556
        %v558 = vlaneseq
        %v559 = vshrl.u32 %v558, 7
        %v560 = vsub.s32 %v557, %v559
        %v561 = vrot.slane %v547, %v560
        %v562 = vcombine.high %v554, %v554
        %v563 = vcombine.high %v561, %v561
        %v568 = vadd.f32 %v541, %v554
        %v569 = vadd.f32 %v542, %v562
        %v570 = vadd.f32 %v543, %v561
        %v571 = vadd.f32 %v544, %v563
        %v576 = vcombine.low %v568, %v569
        %v577 = vcombine.low %v570, %v571
        %v579 = vunpack.c.l.s4 1983009808
        %v580 = vunpack.c.0.s8 %v579
        %v581 = vlaneseq
        %v582 = vshrl.u32 %v581, 7
        %v583 = vsub.s32 %v580, %v582
        %v584 = vrot.slane %v576, %v583
        %v586 = vunpack.c.l.s4 1983009808
        %v587 = vunpack.c.0.s8 %v586
        %v588 = vlaneseq
        %v589 = vshrl.u32 %v588, 7
        %v590 = vsub.s32 %v587, %v589
        %v591 = vrot.slane %v577, %v590
        %v592 = vcombine.low %v584, %v591
        %594 = vst [vmem:[%s328] sm:$0xff] %v592
        %s595 = smul.u32 4, %s18
        %p596 = scmp.lt.s32.totalorder %s595, 7
        %s597 = scalar_select %p596, %s595, 7
        %s598 = smul.addr %s597, 2
        %s599 = scalar_lea.vmem %s6, %s598
        // Predicated region
        $region68: #{branch_forward.3} parent=62 // pred_check
          %p600 = pneg %p177
        $region69: #{branch_forward.3} parent=62 // pred_check_branch
          %602 = sbr.rel (%p600) target = $region71
        $region70: #{branch_forward.3} parent=62 // pred_region
          %s603 = smul.u32 4, %s18
        $region71: #{branch_forward.3} parent=62 // pred_fallthru
          _
      $region63: #{branch_forward.3} parent=5 // pred_fallthru
        _
      %p604 = scmp.le.s32.totalorder 2, %s13
      // Predicated region
      $region72: #{branch_forward.3} parent=5 // pred_check
        %p605 = pneg %p604
      $region73: #{branch_forward.3} parent=5 // pred_check_branch
        %607 = sbr.rel (%p605) target = $region75
      $region74: #{branch_forward.3} parent=5 // pred_region
        %s608 = ssub.s32 %s13, 2
        // Predicated region
        $region76: #{branch_forward.3} parent=74 // pred_check
          %p609 = pneg %p183
        $region77: #{branch_forward.3} parent=74 // pred_check_branch
          %611 = sbr.rel (%p609) target = $region79
        $region78: #{branch_forward.3} parent=74 // pred_region
          %s612 = smul.u32 4, %s19
          %p613 = scmp.lt.s32.totalorder %s612, 7
          %s614 = scalar_select %p613, %s612, 7
          %s615 = smul.addr %s614, 2
          %s616 = scalar_lea.vmem %s6, %s615
        $region79: #{branch_forward.3} parent=74 // pred_fallthru
          _
      $region75: #{branch_forward.3} parent=5 // pred_fallthru
        _
    $region6: #{branch_forward.3} parent=1 // loop_footer
      %s17 = sadd.s32 1, %s13
    $region7: #{branch_forward.3} parent=1 // loop_footer_branch
      %12 = sbr.rel target = $region3
    $region8: #{branch_forward.3} parent=1 // loop_exit
      _

// kernel: branch_forward.2
$region0: #{branch_forward.2}
  #allocation0 [shape = 'u32[]', space=smem, size = 0x4, offset = 0x4, fixed_abs, tag = 'smem constant byte address 0x4 - core index']
  #allocation1 [shape = 'u32[144,128]{1,0:T(1,128)}', space=vmem, size = 0x12000, scoped, tag = 'internal scratch']
  %s0 = inlined_call_operand.vmem [shape: f32[2,1024], index: 0, kind: input, shape index: {}]
  %s1 = inlined_call_operand.vmem [shape: bf16[1024,32], index: 1, kind: input, shape index: {}]
  %s2 = inlined_call_operand.vmem [shape: f32[2,2,32], index: 2, kind: output, shape index: {}]
  %s3 = sld [smem:[#allocation0]]
  $region45: #{branch_forward.2} parent=0
    _
  %s5 = ssub.s32 1, %s3
  %s6 = scalar_select 0, %s5, %s3
  loop: start=0, step=1, limit=4
  $region2: #{branch_forward.2} parent=0 // loop_pre_header
    _
  $region3: #{branch_forward.2} parent=0 // loop_header
    %s8 = sphi 0, %s12
    %p9 = scmp.ge.s32.totalorder %s8, 4
    %s15 = sphi 0, %s27
    %s16 = sphi 0, %s23
    %s17 = sphi 0, %s15
    %s18 = sphi 0, %s16
    %s19 = sphi 0, %s17
    %s20 = sphi 0, %s18
    %s32 = sphi 0, %s34
    %s35 = sphi 0, %s32
    %s36 = sphi 0, %s35
    %s52 = sphi 0, %s36
    %s60 = sphi 0, %s62
    %s63 = sphi 0, %s60
    %s64 = sphi 0, %s63
    %s80 = sphi 0, %s64
    %s86 = sphi 0, %s88
    %s89 = sphi 0, %s86
    %s90 = sphi 0, %s89
    %s106 = sphi 0, %s90
  $region4: #{branch_forward.2} parent=0 // loop_header_branch
    %11 = sbr.rel (%p9) target = $region8
  $region5: #{branch_forward.2} parent=0 // loop_body
    %s13 = ssub.s32 %s8, 1
    %s14 = ssub.s32 %s8, 2
    %s21 = sadd.s32 1, %s16
    %p22 = scmp.ge.s32.totalorder %s21, 1
    %s23 = scalar_select %p22, 0, %s21
    %s24 = sadd.s32 1, %s15
    %s25 = scalar_select %p22, %s24, %s15
    %p26 = scmp.ge.s32.totalorder %s25, 2
    %s27 = scalar_select %p26, 0, %s25
    %s28 = sadd.s32 %s15, %s16
    %s29 = sadd.s32 %s27, %s23
    %s30 = ssub.s32 %s28, %s29
    %p31 = scmp.eq.s32.totalorder %s30, 0
    %s33 = sadd.s32 %s32, 1
    %s34 = scalar_select %p31, %s32, %s33
    %p37 = pneg %p31
    %p38 = scmp.eq.s32.totalorder %s8, 1
    %p39 = por %p37, %p38
    %p40 = scmp.ne.s32.totalorder %s32, %s35
    %p41 = scmp.eq.s32.totalorder %s8, 0
    %p42 = por %p40, %p41
    %p43 = scmp.ne.s32.totalorder %s32, %s35
    %p44 = scmp.eq.s32.totalorder %s13, 1
    %p45 = por %p43, %p44
    %p46 = scmp.ne.s32.totalorder %s35, %s36
    %p47 = scmp.eq.s32.totalorder %s13, 0
    %p48 = por %p46, %p47
    %p49 = scmp.ne.s32.totalorder %s35, %s36
    %p50 = scmp.eq.s32.totalorder %s14, 1
    %p51 = por %p49, %p50
    %p53 = scmp.ne.s32.totalorder %s36, %s52
    %p54 = scmp.eq.s32.totalorder %s14, 0
    %p55 = por %p53, %p54
    %s56 = sadd.s32 %s15, %s16
    %s57 = sadd.s32 %s27, %s23
    %s58 = ssub.s32 %s56, %s57
    %p59 = scmp.eq.s32.totalorder %s58, 0
    %s61 = sadd.s32 %s60, 1
    %s62 = scalar_select %p59, %s60, %s61
    %p65 = pneg %p59
    %p66 = scmp.eq.s32.totalorder %s8, 1
    %p67 = por %p65, %p66
    %p68 = scmp.ne.s32.totalorder %s60, %s63
    %p69 = scmp.eq.s32.totalorder %s8, 0
    %p70 = por %p68, %p69
    %p71 = scmp.ne.s32.totalorder %s60, %s63
    %p72 = scmp.eq.s32.totalorder %s13, 1
    %p73 = por %p71, %p72
    %p74 = scmp.ne.s32.totalorder %s63, %s64
    %p75 = scmp.eq.s32.totalorder %s13, 0
    %p76 = por %p74, %p75
    %p77 = scmp.ne.s32.totalorder %s63, %s64
    %p78 = scmp.eq.s32.totalorder %s14, 1
    %p79 = por %p77, %p78
    %p81 = scmp.ne.s32.totalorder %s64, %s80
    %p82 = scmp.eq.s32.totalorder %s14, 0
    %p83 = por %p81, %p82
    %s84 = ssub.s32 %s15, %s27
    %p85 = scmp.eq.s32.totalorder %s84, 0
    %s87 = sadd.s32 %s86, 1
    %s88 = scalar_select %p85, %s86, %s87
    %p91 = pneg %p85
    %p92 = scmp.eq.s32.totalorder %s8, 1
    %p93 = por %p91, %p92
    %p94 = scmp.ne.s32.totalorder %s86, %s89
    %p95 = scmp.eq.s32.totalorder %s8, 0
    %p96 = por %p94, %p95
    %p97 = scmp.ne.s32.totalorder %s86, %s89
    %p98 = scmp.eq.s32.totalorder %s13, 1
    %p99 = por %p97, %p98
    %p100 = scmp.ne.s32.totalorder %s89, %s90
    %p101 = scmp.eq.s32.totalorder %s13, 0
    %p102 = por %p100, %p101
    %p103 = scmp.ne.s32.totalorder %s89, %s90
    %p104 = scmp.eq.s32.totalorder %s14, 1
    %p105 = por %p103, %p104
    %p107 = scmp.ne.s32.totalorder %s90, %s106
    %p108 = scmp.eq.s32.totalorder %s14, 0
    %p109 = por %p107, %p108
    %p110 = scmp.le.s32.totalorder 1, %s8
    %p111 = scmp.lt.s32.totalorder %s8, 3
    %p112 = pnand %p110, %p111
    %p113 = pneg %p112
    // Predicated region
    $region9: #{branch_forward.2} parent=5 // pred_check
      _
    $region10: #{branch_forward.2} parent=5 // pred_check_branch
      %115 = sbr.rel (%p112) target = $region12
    $region11: #{branch_forward.2} parent=5 // pred_region
      %s116 = ssub.s32 %s8, 1
    $region12: #{branch_forward.2} parent=5 // pred_fallthru
      _
    %p117 = scmp.lt.s32.totalorder %s8, 2
    // Predicated region
    $region13: #{branch_forward.2} parent=5 // pred_check
      %p118 = pneg %p117
    $region14: #{branch_forward.2} parent=5 // pred_check_branch
      %120 = sbr.rel (%p118) target = $region16
    $region15: #{branch_forward.2} parent=5 // pred_region
      // Predicated region
      $region17: #{branch_forward.2} parent=15 // pred_check
        %p121 = pneg %p42
      $region18: #{branch_forward.2} parent=15 // pred_check_branch
        %123 = sbr.rel (%p121) target = $region20
      $region19: #{branch_forward.2} parent=15 // pred_region
        %s124 = sadd.s32 %s15, %s16
        %s125 = smul.u32 4, %s124
        %p126 = scmp.lt.s32.totalorder %s125, 7
        %s127 = scalar_select %p126, %s125, 7
        %s128 = smul.addr %s127, 2
        %s129 = scalar_lea.vmem %s0, %s128
        %s130 = sadd.s32 %s15, %s16
        %s131 = smul.u32 4, %s130
      $region20: #{branch_forward.2} parent=15 // pred_fallthru
        _
      // Predicated region
      $region21: #{branch_forward.2} parent=15 // pred_check
        %p132 = pneg %p70
      $region22: #{branch_forward.2} parent=15 // pred_check_branch
        %134 = sbr.rel (%p132) target = $region24
      $region23: #{branch_forward.2} parent=15 // pred_region
        %s135 = sadd.s32 %s15, %s16
        %s136 = smul.u32 64, %s135
        %p137 = scmp.lt.s32.totalorder %s136, 127
        %s138 = scalar_select %p137, %s136, 127
        %s139 = smul.addr %s138, 4
        %s140 = scalar_lea.vmem %s1, %s139
        %s141 = sadd.s32 %s15, %s16
        %s142 = smul.u32 64, %s141
      $region24: #{branch_forward.2} parent=15 // pred_fallthru
        _
    $region16: #{branch_forward.2} parent=5 // pred_fallthru
      _
    %p143 = scmp.le.s32.totalorder 1, %s8
    %p144 = scmp.lt.s32.totalorder %s8, 3
    %p145 = pnand %p143, %p144
    %p146 = pneg %p145
    // Predicated region
    $region25: #{branch_forward.2} parent=5 // pred_check
      _
    $region26: #{branch_forward.2} parent=5 // pred_check_branch
      %148 = sbr.rel (%p145) target = $region28
    $region27: #{branch_forward.2} parent=5 // pred_region
      %s149 = ssub.s32 %s8, 1
      %s150 = sadd.s32 %s17, %s18
      %s151 = smul.u32 4, %s150
      %p152 = scmp.lt.s32.totalorder %s151, 7
      %s153 = scalar_select %p152, %s151, 7
      %s154 = smul.addr %s153, 2
      %s155 = scalar_lea.vmem %s0, %s154
      %p156 = pneg %p48
      %p157 = pneg %p45
      %s158 = sadd.s32 %s17, %s18
      %s159 = smul.u32 64, %s158
      %p160 = scmp.lt.s32.totalorder %s159, 127
      %s161 = scalar_select %p160, %s159, 127
      %s162 = smul.addr %s161, 4
      %s163 = scalar_lea.vmem %s1, %s162
      %p164 = pneg %p76
      %p165 = pneg %p73
      %p166 = pneg %p102
      %p167 = pneg %p99
      %p168 = scmp.lt.s32.totalorder %s17, 1
      %s169 = scalar_select %p168, %s17, 1
      %s170 = smul.addr %s169, 2
      %s171 = scalar_lea.vmem %s2, %s170
      %s172 = sadd.s32 %s17, %s18
      %s173 = smul.u32 4, %s172
      %p174 = scmp.lt.s32.totalorder %s173, 7
      %s175 = scalar_select %p174, %s173, 7
      %s176 = smul.addr %s175, 2
      %s177 = scalar_lea.vmem %s0, %s176
      %s178 = sadd.s32 %s17, %s18
      %s179 = smul.u32 4, %s178
      %s180 = sadd.s32 %s17, %s18
      %s181 = smul.u32 64, %s180
      %p182 = scmp.lt.s32.totalorder %s181, 127
      %s183 = scalar_select %p182, %s181, 127
      %s184 = smul.addr %s183, 4
      %s185 = scalar_lea.vmem %s1, %s184
      %s186 = sadd.s32 %s17, %s18
      %s187 = smul.u32 64, %s186
      %p188 = scmp.lt.s32.totalorder %s17, 1
      %s189 = scalar_select %p188, %s17, 1
      %s190 = smul.addr %s189, 2
      %s191 = scalar_lea.vmem %s2, %s190
      %p192 = scmp.eq.s32.totalorder %s18, 0
      // Predicated region
      $region29: #{branch_forward.2} parent=27 // pred_check
        %p193 = pneg %p192
      $region30: #{branch_forward.2} parent=27 // pred_check_branch
        %195 = sbr.rel (%p193) target = $region32
      $region31: #{branch_forward.2} parent=27 // pred_region
        %vm196 = vcmask 254976
        %197 = vst.msk [vmem:[%s191] sm:$0x3] %vm196, 0.0
      $region32: #{branch_forward.2} parent=27 // pred_fallthru
        _
      %v198 = vld [vmem:[%s191] sm:$0x3]
      %v199 = vld [vmem:[%s177] sm:$0xff]
      %v200 = vld [vmem:[%s185] sm:$0xf]
      %v201 = vld [vmem:[%s185 + $0x4] sm:$0xf]
      %v202 = vld [vmem:[%s185 + $0x8] sm:$0xf]
      %v203 = vld [vmem:[%s185 + $0xc] sm:$0xf]
      %v204 = vld [vmem:[%s185 + $0x10] sm:$0xf]
      %v205 = vld [vmem:[%s185 + $0x14] sm:$0xf]
      %v206 = vld [vmem:[%s185 + $0x18] sm:$0xf]
      %v207 = vld [vmem:[%s185 + $0x1c] sm:$0xf]
      %v208 = vld [vmem:[%s185 + $0x20] sm:$0xf]
      %v209 = vld [vmem:[%s185 + $0x24] sm:$0xf]
      %v210 = vld [vmem:[%s185 + $0x28] sm:$0xf]
      %v211 = vld [vmem:[%s185 + $0x2c] sm:$0xf]
      %v212 = vld [vmem:[%s185 + $0x30] sm:$0xf]
      %v213 = vld [vmem:[%s185 + $0x34] sm:$0xf]
      %v214 = vld [vmem:[%s185 + $0x38] sm:$0xf]
      %v215 = vld [vmem:[%s185 + $0x3c] sm:$0xf]
      %v216 = vld [vmem:[%s185 + $0x40] sm:$0xf]
      %v217 = vld [vmem:[%s185 + $0x44] sm:$0xf]
      %v218 = vld [vmem:[%s185 + $0x48] sm:$0xf]
      %v219 = vld [vmem:[%s185 + $0x4c] sm:$0xf]
      %v220 = vld [vmem:[%s185 + $0x50] sm:$0xf]
      %v221 = vld [vmem:[%s185 + $0x54] sm:$0xf]
      %v222 = vld [vmem:[%s185 + $0x58] sm:$0xf]
      %v223 = vld [vmem:[%s185 + $0x5c] sm:$0xf]
      %v224 = vld [vmem:[%s185 + $0x60] sm:$0xf]
      %v225 = vld [vmem:[%s185 + $0x64] sm:$0xf]
      %v226 = vld [vmem:[%s185 + $0x68] sm:$0xf]
      %v227 = vld [vmem:[%s185 + $0x6c] sm:$0xf]
      %v228 = vld [vmem:[%s185 + $0x70] sm:$0xf]
      %v229 = vld [vmem:[%s185 + $0x74] sm:$0xf]
      %v230 = vld [vmem:[%s185 + $0x78] sm:$0xf]
      %v231 = vld [vmem:[%s185 + $0x7c] sm:$0xf]
      %v232 = vld [vmem:[%s185 + $0x80] sm:$0xf]
      %v233 = vld [vmem:[%s185 + $0x84] sm:$0xf]
      %v234 = vld [vmem:[%s185 + $0x88] sm:$0xf]
      %v235 = vld [vmem:[%s185 + $0x8c] sm:$0xf]
      %v236 = vld [vmem:[%s185 + $0x90] sm:$0xf]
      %v237 = vld [vmem:[%s185 + $0x94] sm:$0xf]
      %v238 = vld [vmem:[%s185 + $0x98] sm:$0xf]
      %v239 = vld [vmem:[%s185 + $0x9c] sm:$0xf]
      %v240 = vld [vmem:[%s185 + $0xa0] sm:$0xf]
      %v241 = vld [vmem:[%s185 + $0xa4] sm:$0xf]
      %v242 = vld [vmem:[%s185 + $0xa8] sm:$0xf]
      %v243 = vld [vmem:[%s185 + $0xac] sm:$0xf]
      %v244 = vld [vmem:[%s185 + $0xb0] sm:$0xf]
      %v245 = vld [vmem:[%s185 + $0xb4] sm:$0xf]
      %v246 = vld [vmem:[%s185 + $0xb8] sm:$0xf]
      %v247 = vld [vmem:[%s185 + $0xbc] sm:$0xf]
      %v248 = vld [vmem:[%s185 + $0xc0] sm:$0xf]
      %v249 = vld [vmem:[%s185 + $0xc4] sm:$0xf]
      %v250 = vld [vmem:[%s185 + $0xc8] sm:$0xf]
      %v251 = vld [vmem:[%s185 + $0xcc] sm:$0xf]
      %v252 = vld [vmem:[%s185 + $0xd0] sm:$0xf]
      %v253 = vld [vmem:[%s185 + $0xd4] sm:$0xf]
      %v254 = vld [vmem:[%s185 + $0xd8] sm:$0xf]
      %v255 = vld [vmem:[%s185 + $0xdc] sm:$0xf]
      %v256 = vld [vmem:[%s185 + $0xe0] sm:$0xf]
      %v257 = vld [vmem:[%s185 + $0xe4] sm:$0xf]
      %v258 = vld [vmem:[%s185 + $0xe8] sm:$0xf]
      %v259 = vld [vmem:[%s185 + $0xec] sm:$0xf]
      %v260 = vld [vmem:[%s185 + $0xf0] sm:$0xf]
      %v261 = vld [vmem:[%s185 + $0xf4] sm:$0xf]
      %v262 = vld [vmem:[%s185 + $0xf8] sm:$0xf]
      %v263 = vld [vmem:[%s185 + $0xfc] sm:$0xf]
      %v264 = vunpack.c.l.bf16 %v200
      %v265 = vunpack.c.l.bf16 %v201
      %v266 = vunpack.c.l.bf16 %v202
      %v267 = vunpack.c.l.bf16 %v203
      %v268 = vunpack.c.l.bf16 %v204
      %v269 = vunpack.c.l.bf16 %v205
      %v270 = vunpack.c.l.bf16 %v206
      %v271 = vunpack.c.l.bf16 %v207
      %v272 = vunpack.c.l.bf16 %v208
      %v273 = vunpack.c.l.bf16 %v209
      %v274 = vunpack.c.l.bf16 %v210
      %v275 = vunpack.c.l.bf16 %v211
      %v276 = vunpack.c.l.bf16 %v212
      %v277 = vunpack.c.l.bf16 %v213
      %v278 = vunpack.c.l.bf16 %v214
      %v279 = vunpack.c.l.bf16 %v215
      %v280 = vunpack.c.l.bf16 %v216
      %v281 = vunpack.c.l.bf16 %v217
      %v282 = vunpack.c.l.bf16 %v218
      %v283 = vunpack.c.l.bf16 %v219
      %v284 = vunpack.c.l.bf16 %v220
      %v285 = vunpack.c.l.bf16 %v221
      %v286 = vunpack.c.l.bf16 %v222
      %v287 = vunpack.c.l.bf16 %v223
      %v288 = vunpack.c.l.bf16 %v224
      %v289 = vunpack.c.l.bf16 %v225
      %v290 = vunpack.c.l.bf16 %v226
      %v291 = vunpack.c.l.bf16 %v227
      %v292 = vunpack.c.l.bf16 %v228
      %v293 = vunpack.c.l.bf16 %v229
      %v294 = vunpack.c.l.bf16 %v230
      %v295 = vunpack.c.l.bf16 %v231
      %v296 = vunpack.c.l.bf16 %v232
      %v297 = vunpack.c.l.bf16 %v233
      %v298 = vunpack.c.l.bf16 %v234
      %v299 = vunpack.c.l.bf16 %v235
      %v300 = vunpack.c.l.bf16 %v236
      %v301 = vunpack.c.l.bf16 %v237
      %v302 = vunpack.c.l.bf16 %v238
      %v303 = vunpack.c.l.bf16 %v239
      %v304 = vunpack.c.l.bf16 %v240
      %v305 = vunpack.c.l.bf16 %v241
      %v306 = vunpack.c.l.bf16 %v242
      %v307 = vunpack.c.l.bf16 %v243
      %v308 = vunpack.c.l.bf16 %v244
      %v309 = vunpack.c.l.bf16 %v245
      %v310 = vunpack.c.l.bf16 %v246
      %v311 = vunpack.c.l.bf16 %v247
      %v312 = vunpack.c.l.bf16 %v248
      %v313 = vunpack.c.l.bf16 %v249
      %v314 = vunpack.c.l.bf16 %v250
      %v315 = vunpack.c.l.bf16 %v251
      %v316 = vunpack.c.l.bf16 %v252
      %v317 = vunpack.c.l.bf16 %v253
      %v318 = vunpack.c.l.bf16 %v254
      %v319 = vunpack.c.l.bf16 %v255
      %v320 = vunpack.c.l.bf16 %v256
      %v321 = vunpack.c.l.bf16 %v257
      %v322 = vunpack.c.l.bf16 %v258
      %v323 = vunpack.c.l.bf16 %v259
      %v324 = vunpack.c.l.bf16 %v260
      %v325 = vunpack.c.l.bf16 %v261
      %v326 = vunpack.c.l.bf16 %v262
      %v327 = vunpack.c.l.bf16 %v263
      %v329 = vcombine.high %v199, %v199
      %v331 = vunpack.c.l.s4 1983009808
      %v332 = vunpack.c.0.s8 %v331
      %v333 = vlaneseq
      %v334 = vshrl.u32 %v333, 7
      %v335 = vsub.s32 %v332, %v334
      %v336 = vrot.slane %v199, %v335
      %v338 = vunpack.c.l.s4 1983009808
      %v339 = vunpack.c.0.s8 %v338
      %v340 = vlaneseq
      %v341 = vshrl.u32 %v340, 7
      %v342 = vsub.s32 %v339, %v341
      %v343 = vrot.slane %v329, %v342
      %v344 = vcombine.high %v336, %v336
      %v345 = vcombine.high %v343, %v343
      %350 = vmatprep.subr.mxu0 0.0
      %351 = vmatpush1.msra.mxu0 %v264
      %352 = vmatprep.subr.mxu0 0.0
      %353 = vmatpush1.msra.mxu0 %v265
      %354 = vmatprep.subr.mxu0 0.0
      %355 = vmatpush1.msra.mxu0 %v266
      %356 = vmatprep.subr.mxu0 0.0
      %357 = vmatpush1.msra.mxu0 %v267
      %358 = vmatprep.subr.mxu0 0.0
      %359 = vmatpush1.msra.mxu0 %v268
      %360 = vmatprep.subr.mxu0 0.0
      %361 = vmatpush1.msra.mxu0 %v269
      %362 = vmatprep.subr.mxu0 0.0
      %363 = vmatpush1.msra.mxu0 %v270
      %364 = vmatprep.subr.mxu0 0.0
      %365 = vmatpush1.msra.mxu0 %v271
      %366 = vmatprep.subr.mxu0 0.0
      %367 = vmatpush1.msra.mxu0 %v272
      %368 = vmatprep.subr.mxu0 0.0
      %369 = vmatpush1.msra.mxu0 %v273
      %370 = vmatprep.subr.mxu0 0.0
      %371 = vmatpush1.msra.mxu0 %v274
      %372 = vmatprep.subr.mxu0 0.0
      %373 = vmatpush1.msra.mxu0 %v275
      %374 = vmatprep.subr.mxu0 0.0
      %375 = vmatpush1.msra.mxu0 %v276
      %376 = vmatprep.subr.mxu0 0.0
      %377 = vmatpush1.msra.mxu0 %v277
      %378 = vmatprep.subr.mxu0 0.0
      %379 = vmatpush1.msra.mxu0 %v278
      %380 = vmatprep.subr.mxu0 0.0
      %381 = vmatpush1.msra.mxu0 %v279
      %382 = vmatprep.subr.mxu0 0.0
      %383 = vmatpush1.msra.mxu0 %v280
      %384 = vmatprep.subr.mxu0 0.0
      %385 = vmatpush1.msra.mxu0 %v281
      %386 = vmatprep.subr.mxu0 0.0
      %387 = vmatpush1.msra.mxu0 %v282
      %388 = vmatprep.subr.mxu0 0.0
      %389 = vmatpush1.msra.mxu0 %v283
      %390 = vmatprep.subr.mxu0 0.0
      %391 = vmatpush1.msra.mxu0 %v284
      %392 = vmatprep.subr.mxu0 0.0
      %393 = vmatpush1.msra.mxu0 %v285
      %394 = vmatprep.subr.mxu0 0.0
      %395 = vmatpush1.msra.mxu0 %v286
      %396 = vmatprep.subr.mxu0 0.0
      %397 = vmatpush1.msra.mxu0 %v287
      %398 = vmatprep.subr.mxu0 0.0
      %399 = vmatpush1.msra.mxu0 %v288
      %400 = vmatprep.subr.mxu0 0.0
      %401 = vmatpush1.msra.mxu0 %v289
      %402 = vmatprep.subr.mxu0 0.0
      %403 = vmatpush1.msra.mxu0 %v290
      %404 = vmatprep.subr.mxu0 0.0
      %405 = vmatpush1.msra.mxu0 %v291
      %406 = vmatprep.subr.mxu0 0.0
      %407 = vmatpush1.msra.mxu0 %v292
      %408 = vmatprep.subr.mxu0 0.0
      %409 = vmatpush1.msra.mxu0 %v293
      %410 = vmatprep.subr.mxu0 0.0
      %411 = vmatpush1.msra.mxu0 %v294
      %412 = vmatprep.subr.mxu0 0.0
      %413 = vmatpush1.msra.mxu0 %v295
      %414 = vmatprep.mubr.f32.mxu0 %v344
      %415 = vmatmul.mubr.f32.gmra.mrb[0].mxu0 %v336
      %v416 = vpop.f32.mrb[0].mxu0
      %v417 = vadd.f32 0.0, %v416
      %v418 = vpop.f32.mrb[0].mxu0
      %419 = vdwg.mxu0
      %420 = vmatprep.subr.mxu0 0.0
      %421 = vmatpush1.msra.mxu0 %v296
      %422 = vmatprep.subr.mxu0 0.0
      %423 = vmatpush1.msra.mxu0 %v297
      %424 = vmatprep.subr.mxu0 0.0
      %425 = vmatpush1.msra.mxu0 %v298
      %426 = vmatprep.subr.mxu0 0.0
      %427 = vmatpush1.msra.mxu0 %v299
      %428 = vmatprep.subr.mxu0 0.0
      %429 = vmatpush1.msra.mxu0 %v300
      %430 = vmatprep.subr.mxu0 0.0
      %431 = vmatpush1.msra.mxu0 %v301
      %432 = vmatprep.subr.mxu0 0.0
      %433 = vmatpush1.msra.mxu0 %v302
      %434 = vmatprep.subr.mxu0 0.0
      %435 = vmatpush1.msra.mxu0 %v303
      %436 = vmatprep.subr.mxu0 0.0
      %437 = vmatpush1.msra.mxu0 %v304
      %438 = vmatprep.subr.mxu0 0.0
      %439 = vmatpush1.msra.mxu0 %v305
      %440 = vmatprep.subr.mxu0 0.0
      %441 = vmatpush1.msra.mxu0 %v306
      %442 = vmatprep.subr.mxu0 0.0
      %443 = vmatpush1.msra.mxu0 %v307
      %444 = vmatprep.subr.mxu0 0.0
      %445 = vmatpush1.msra.mxu0 %v308
      %446 = vmatprep.subr.mxu0 0.0
      %447 = vmatpush1.msra.mxu0 %v309
      %448 = vmatprep.subr.mxu0 0.0
      %449 = vmatpush1.msra.mxu0 %v310
      %450 = vmatprep.subr.mxu0 0.0
      %451 = vmatpush1.msra.mxu0 %v311
      %452 = vmatprep.subr.mxu0 0.0
      %453 = vmatpush1.msra.mxu0 %v312
      %454 = vmatprep.subr.mxu0 0.0
      %455 = vmatpush1.msra.mxu0 %v313
      %456 = vmatprep.subr.mxu0 0.0
      %457 = vmatpush1.msra.mxu0 %v314
      %458 = vmatprep.subr.mxu0 0.0
      %459 = vmatpush1.msra.mxu0 %v315
      %460 = vmatprep.subr.mxu0 0.0
      %461 = vmatpush1.msra.mxu0 %v316
      %462 = vmatprep.subr.mxu0 0.0
      %463 = vmatpush1.msra.mxu0 %v317
      %464 = vmatprep.subr.mxu0 0.0
      %465 = vmatpush1.msra.mxu0 %v318
      %466 = vmatprep.subr.mxu0 0.0
      %467 = vmatpush1.msra.mxu0 %v319
      %468 = vmatprep.subr.mxu0 0.0
      %469 = vmatpush1.msra.mxu0 %v320
      %470 = vmatprep.subr.mxu0 0.0
      %471 = vmatpush1.msra.mxu0 %v321
      %472 = vmatprep.subr.mxu0 0.0
      %473 = vmatpush1.msra.mxu0 %v322
      %474 = vmatprep.subr.mxu0 0.0
      %475 = vmatpush1.msra.mxu0 %v323
      %476 = vmatprep.subr.mxu0 0.0
      %477 = vmatpush1.msra.mxu0 %v324
      %478 = vmatprep.subr.mxu0 0.0
      %479 = vmatpush1.msra.mxu0 %v325
      %480 = vmatprep.subr.mxu0 0.0
      %481 = vmatpush1.msra.mxu0 %v326
      %482 = vmatprep.subr.mxu0 0.0
      %483 = vmatpush1.msra.mxu0 %v327
      %484 = vmatprep.mubr.f32.mxu0 %v345
      %485 = vmatmul.mubr.f32.gmra.mrb[0].mxu0 %v343
      %v486 = vpop.f32.mrb[0].mxu0
      %v487 = vadd.f32 %v417, %v486
      %v488 = vpop.f32.mrb[0].mxu0
      %489 = vdwg.mxu0
      %v490 = vadd.f32 %v198, %v487
      %vm491 = vcmask 254976
      %492 = vst.msk [vmem:[%s191] sm:$0x3] %vm491, %v490
      %p493 = scmp.lt.s32.totalorder %s17, 1
      %s494 = scalar_select %p493, %s17, 1
      %s495 = smul.addr %s494, 2
      %s496 = scalar_lea.vmem %s2, %s495
      // Predicated region
      $region33: #{branch_forward.2} parent=27 // pred_check
        %p497 = pneg %p99
      $region34: #{branch_forward.2} parent=27 // pred_check_branch
        %499 = sbr.rel (%p497) target = $region36
      $region35: #{branch_forward.2} parent=27 // pred_region
        _
      $region36: #{branch_forward.2} parent=27 // pred_fallthru
        _
    $region28: #{branch_forward.2} parent=5 // pred_fallthru
      _
    %p500 = scmp.le.s32.totalorder 2, %s8
    // Predicated region
    $region37: #{branch_forward.2} parent=5 // pred_check
      %p501 = pneg %p500
    $region38: #{branch_forward.2} parent=5 // pred_check_branch
      %503 = sbr.rel (%p501) target = $region40
    $region39: #{branch_forward.2} parent=5 // pred_region
      %s504 = ssub.s32 %s8, 2
      // Predicated region
      $region41: #{branch_forward.2} parent=39 // pred_check
        %p505 = pneg %p105
      $region42: #{branch_forward.2} parent=39 // pred_check_branch
        %507 = sbr.rel (%p505) target = $region44
      $region43: #{branch_forward.2} parent=39 // pred_region
        %p508 = scmp.lt.s32.totalorder %s19, 1
        %s509 = scalar_select %p508, %s19, 1
        %s510 = smul.addr %s509, 2
        %s511 = scalar_lea.vmem %s2, %s510
      $region44: #{branch_forward.2} parent=39 // pred_fallthru
        _
    $region40: #{branch_forward.2} parent=5 // pred_fallthru
      _
  $region6: #{branch_forward.2} parent=0 // loop_footer
    %s12 = sadd.s32 1, %s8
  $region7: #{branch_forward.2} parent=0 // loop_footer_branch
    %7 = sbr.rel target = $region3
  $region8: #{branch_forward.2} parent=0 // loop_exit
    _

</llo_original>
